<compile_context>
chip_gen: v7x
topology: tpu7x:2x2x1
jax: 0.10.0
libtpu: 0.0.40
codegen_flags: <defaults>
</compile_context>

<pallas_src>
import functools
import math

import jax
import jax.numpy as jnp
from jax.experimental import pallas as pl
from jax.experimental.pallas import tpu as pltpu


def _round_up(a, b):
    return (a + b - 1) // b * b


def _conv1d_kernel(x_ref, halo_ref, w_ref, b_ref, o_ref, *, dilation, ksize,
                   stacked):
    # x_ref:    (1, C_in_p, Lt)   current input tile (compute dtype)
    # halo_ref: (1, C_in_p, H)    first H lanes of the next tile (H >= dilation*(K-1))
    # w_ref:    (C_out_p, K*C_in_p) if stacked else (K, C_out_p, C_in_p)
    # b_ref:    (C_out_p, 1)      f32 bias
    # o_ref:    (1, C_out_p, Lt)  lane-dense output tile (ragged edge masked by Pallas)
    main = x_ref[0]                                   # (C_in_p, Lt)
    lt = main.shape[1]

    if ksize == 1:
        w0 = w_ref[...] if stacked else w_ref[0]
        acc = jnp.dot(w0, main, preferred_element_type=jnp.float32)
    else:
        # Haloed slab for the shifted taps (lane-aligned concat: Lt % 128 == 0).
        full = jnp.concatenate([main, halo_ref[0]], axis=1)   # (C_in_p, Lt + H)
        if stacked:
            # Small contraction depth: fold all K taps into one deep MXU dot.
            taps = [full[:, k * dilation: k * dilation + lt] for k in range(ksize)]
            op = jnp.concatenate(taps, axis=0)                 # (K*C_in_p, Lt)
            acc = jnp.dot(w_ref[...], op, preferred_element_type=jnp.float32)
        else:
            # Deep contraction already: K accumulating dots, no tap-stack copy.
            acc = jnp.dot(w_ref[0], main, preferred_element_type=jnp.float32)
            for k in range(1, ksize):
                acc += jnp.dot(w_ref[k],
                               full[:, k * dilation: k * dilation + lt],
                               preferred_element_type=jnp.float32)

    o_ref[0] = (acc + b_ref[...]).astype(o_ref.dtype)


def custom_conv1d(x, weight, bias, padding, dilation, *,
                  lt_target=1024, compute_dtype=None, wide_mxu_depth=256):
    """Equivalent of F.conv1d(F.pad(x, (padding, 0)), weight, bias, dilation=dilation).

    x: (N, C_in, L), weight: (C_out, C_in, K), bias: (C_out,)
    """
    N, C_in, L = x.shape
    C_out, _, K = weight.shape
    out_dtype = x.dtype
    compute_dtype = x.dtype if compute_dtype is None else jnp.dtype(compute_dtype)

    halo = dilation * (K - 1)
    Lp = L + padding
    Lout = Lp - halo
    assert Lout >= 1, "conv output length must be positive"

    in_bytes = jnp.dtype(compute_dtype).itemsize
    out_bytes = jnp.dtype(out_dtype).itemsize

    # Channel padding granule: 8 rows for 32-bit, 16 for bf16, 32 for 8-bit.
    granule = max(8, 32 // in_bytes)
    C_in_p = _round_up(C_in, granule)
    C_out_p = _round_up(C_out, granule)

    # Stacked deep-contraction path only while the MXU depth is underfilled.
    stacked = (K == 1) or (K * C_in_p) < wide_mxu_depth

    # ---- per-generation VMEM budget -----------------------------------------
    try:
        cap = int(getattr(pltpu.get_tpu_info(), "vmem_capacity_bytes",
                          64 * 1024 * 1024))
    except Exception:
        cap = 64 * 1024 * 1024                       # v7x-safe fallback
    vmem_limit = min(int(cap * 0.85), 112 * 1024 * 1024)
    budget = int(vmem_limit * 0.75)

    # ---- L tiling ------------------------------------------------------------
    H = _round_up(max(halo, 1), 128)                 # lane-aligned halo width
    Lt = max(H, _round_up(min(lt_target, _round_up(Lout, 128)), H))

    def working_set(lt):
        w_bytes = C_out_p * K * C_in_p * in_bytes
        est = 2 * C_in_p * (lt + H) * in_bytes       # main + halo double buffers
        est += 2 * (w_bytes + C_out_p * 4)           # weight + bias (x2 buffers)
        est += 2 * C_out_p * lt * out_bytes          # output double buffer
        est += C_out_p * lt * 4                      # f32 accumulator
        if K >= 2:
            est += C_in_p * (lt + H) * in_bytes      # concatenated haloed slab
            if stacked:
                est += K * C_in_p * lt * in_bytes    # stacked tap operand
        return est

    while Lt > max(H, 128) and working_set(Lt) > budget:
        Lt = max(H, _round_up(Lt // 2, H))

    # Expose >= 2 independent grid steps for multi-TensorCore chips (v7x).
    while N * (-(-Lout // Lt)) < 2:
        new_lt = max(H, 128, _round_up(Lt // 2, H))
        if new_lt >= Lt:
            break
        Lt = new_lt

    nJ = -(-Lout // Lt)
    lt_over_h = Lt // H
    Lx = nJ * Lt + H                                 # covers the last tile's halo

    # ---- wrapper-side layout glue (single fused pad+cast pass over x) --------
    xp = jnp.pad(x.astype(compute_dtype),
                 ((0, 0), (0, C_in_p - C_in), (padding, Lx - Lp)))

    wp = jnp.pad(weight, ((0, C_out_p - C_out), (0, C_in_p - C_in), (0, 0)))
    wp = wp.astype(compute_dtype)
    if stacked:
        # contraction index = k*C_in_p + c, matching the stacked tap operand
        w_arg = jnp.transpose(wp, (0, 2, 1)).reshape(C_out_p, K * C_in_p)
        w_spec = pl.BlockSpec((C_out_p, K * C_in_p), lambda n, j: (0, 0))
    else:
        w_arg = jnp.transpose(wp, (2, 0, 1))         # (K, C_out_p, C_in_p)
        w_spec = pl.BlockSpec((K, C_out_p, C_in_p), lambda n, j: (0, 0, 0))
    b_arg = jnp.pad(bias, (0, C_out_p - C_out)).astype(jnp.float32)
    b_arg = b_arg.reshape(C_out_p, 1)

    kernel = functools.partial(_conv1d_kernel, dilation=dilation, ksize=K,
                               stacked=stacked)

    in_specs = [
        # current L tile of the padded input
        pl.BlockSpec((1, C_in_p, Lt), lambda n, j: (n, 0, j)),
        # halo: first H lanes of the next L tile (same array, 128-aligned)
        pl.BlockSpec((1, C_in_p, H), lambda n, j: (n, 0, (j + 1) * lt_over_h)),
        w_spec,
        pl.BlockSpec((C_out_p, 1), lambda n, j: (0, 0)),
    ]

    def call(out_c, out_l):
        return pl.pallas_call(
            kernel,
            out_shape=jax.ShapeDtypeStruct((N, out_c, out_l), out_dtype),
            grid_spec=pltpu.PrefetchScalarGridSpec(
                num_scalar_prefetch=0,
                grid=(N, nJ),
                in_specs=in_specs,
                out_specs=pl.BlockSpec((1, C_out_p, Lt), lambda n, j: (n, 0, j)),
            ),
            compiler_params=pltpu.CompilerParams(
                dimension_semantics=("parallel", "parallel"),
                vmem_limit_bytes=vmem_limit,
            ),
        )(xp, xp, w_arg, b_arg)

    try:
        # Lean path: exact (N, C_out, Lout) output; Pallas masks the ragged
        # final blocks on store -> no extra HBM slice pass over the output.
        return call(C_out, Lout)
    except Exception:
        # Conservative fallback: fully padded output + slice (proven path).
        out = call(C_out_p, nJ * Lt)
        return out[:, :C_out, :Lout]


def _reference_conv1d(x, weight, bias, padding, dilation):
    xp = jnp.pad(x, ((0, 0), (0, 0), (padding, 0)))
    out = jax.lax.conv_general_dilated(
        xp, weight,
        window_strides=(1,),
        padding="VALID",
        rhs_dilation=(dilation,),
        dimension_numbers=("NCH", "OIH", "NCH"),
    )
    return out + bias[None, :, None]


if __name__ == "__main__":
    key = jax.random.PRNGKey(0)

    def make_case(k, N, C_in, C_out, L, K, dilation, padding=None):
        padding = dilation * (K - 1) if padding is None else padding
        kx, kw, kb = jax.random.split(k, 3)
        s = math.sqrt(1.0 / (C_in * K))
        x = jax.random.normal(kx, (N, C_in, L), jnp.float32)
        w = jax.random.uniform(kw, (C_out, C_in, K), jnp.float32, minval=-s, maxval=s)
        b = jax.random.uniform(kb, (C_out,), jnp.float32, minval=-s, maxval=s)
        return x, w, b, padding, dilation

    keys = jax.random.split(key, 4)

    # 1) module-sized toy shapes; ragged C_out and short (ragged) L.
    x, w, b, pad, dil = make_case(keys[0], N=2, C_in=4, C_out=6, L=16, K=3, dilation=2)
    out = jax.block_until_ready(custom_conv1d(x, w, b, pad, dil))
    ref = _reference_conv1d(x, w, b, pad, dil)
    assert out.shape == ref.shape, (out.shape, ref.shape)
    assert jnp.allclose(out, ref, atol=1e-5, rtol=1e-5), "case1 mismatch vs reference"

    # 2) multi-tile halo path (3 L tiles), stacked deep-contraction dot.
    x, w, b, pad, dil = make_case(keys[1], N=2, C_in=8, C_out=16, L=300, K=2, dilation=4)
    out = jax.block_until_ready(custom_conv1d(x, w, b, pad, dil, lt_target=128))
    ref = _reference_conv1d(x, w, b, pad, dil)
    assert out.shape == ref.shape, (out.shape, ref.shape)
    assert jnp.allclose(out, ref, atol=1e-5, rtol=1e-5), "case2 mismatch vs reference"

    # 2b) same inputs with bf16 MXU operands (f32 accumulate + f32 bias).
    out_bf16 = jax.block_until_ready(
        custom_conv1d(x, w, b, pad, dil, lt_target=128, compute_dtype=jnp.bfloat16))
    assert jnp.allclose(out_bf16, ref, atol=5e-2, rtol=5e-2), "bf16 mismatch vs reference"

    # 3) deep contraction (K*C_in_p >= 256) -> per-tap accumulating MXU dots.
    x, w, b, pad, dil = make_case(keys[2], N=1, C_in=128, C_out=16, L=256, K=3, dilation=2)
    out = jax.block_until_ready(custom_conv1d(x, w, b, pad, dil, lt_target=128))
    ref = _reference_conv1d(x, w, b, pad, dil)
    assert out.shape == ref.shape, (out.shape, ref.shape)
    assert jnp.allclose(out, ref, atol=1e-4, rtol=1e-4), "case3 mismatch vs reference"

    # 4) padding != dilation*(K-1) (general left-pad), odd channel counts.
    x, w, b, pad, dil = make_case(keys[3], N=1, C_in=3, C_out=5, L=40, K=2,
                                  dilation=3, padding=7)
    out = jax.block_until_ready(custom_conv1d(x, w, b, pad, dil))
    ref = _reference_conv1d(x, w, b, pad, dil)
    assert out.shape == ref.shape, (out.shape, ref.shape)
    assert jnp.allclose(out, ref, atol=1e-5, rtol=1e-5), "case4 mismatch vs reference"

    print("KERNEL_OK")
</pallas_src>

<mosaic_0001>
module attributes {stable_mosaic.version = 11 : i64} {
  func.func @_conv1d_kernel(%arg0: i32, %arg1: i32, %arg2: memref<1x8x128xf32, #tpu.memory_space<vmem>>, %arg3: memref<1x8x128xf32, #tpu.memory_space<vmem>>, %arg4: memref<8x24xf32, #tpu.memory_space<vmem>>, %arg5: memref<8x1xf32, #tpu.memory_space<vmem>>, %arg6: memref<1x8x128xf32, #tpu.memory_space<vmem>>) attributes {dimension_semantics = [#tpu.dimension_semantics<parallel>, #tpu.dimension_semantics<parallel>], iteration_bounds = array<i64: 2, 1>, scalar_prefetch = 0 : i64, scratch_operands = 0 : i64, tpu.core_type = #tpu.core_type<tc>, window_params = [{transform_indices = @transform_0, window_bounds = array<i64: 1, 8, 128>}, {transform_indices = @transform_1, window_bounds = array<i64: 1, 8, 128>}, {pipeline_mode = #tpu.pipeline_mode<synchronous>, transform_indices = @transform_2, window_bounds = array<i64: 8, 24>}, {pipeline_mode = #tpu.pipeline_mode<synchronous>, transform_indices = @transform_3, window_bounds = array<i64: 8, 1>}, {transform_indices = @transform_4, window_bounds = array<i64: 1, 8, 128>}]} {
    %c0 = arith.constant 0 : index
    %c0_0 = arith.constant 0 : index
    %c0_1 = arith.constant 0 : index
    %0 = vector.load %arg2[%c0, %c0_0, %c0_1] : memref<1x8x128xf32, #tpu.memory_space<vmem>>, vector<1x8x128xf32>
    %1 = vector.shape_cast %0 : vector<1x8x128xf32> to vector<8x128xf32>
    %c0_2 = arith.constant 0 : index
    %c0_3 = arith.constant 0 : index
    %c0_4 = arith.constant 0 : index
    %2 = vector.load %arg3[%c0_2, %c0_3, %c0_4] : memref<1x8x128xf32, #tpu.memory_space<vmem>>, vector<1x8x128xf32>
    %3 = vector.shape_cast %2 : vector<1x8x128xf32> to vector<8x128xf32>
    %4 = tpu.concatenate %1, %3 in 1 : vector<8x128xf32>, vector<8x128xf32> -> vector<8x256xf32>
    %5 = vector.extract_strided_slice %4 {offsets = [0, 0], sizes = [8, 128], strides = [1, 1]} : vector<8x256xf32> to vector<8x128xf32>
    %6 = vector.extract_strided_slice %4 {offsets = [0, 2], sizes = [8, 128], strides = [1, 1]} : vector<8x256xf32> to vector<8x128xf32>
    %7 = vector.extract_strided_slice %4 {offsets = [0, 4], sizes = [8, 128], strides = [1, 1]} : vector<8x256xf32> to vector<8x128xf32>
    %8 = tpu.concatenate %5, %6, %7 in 0 : vector<8x128xf32>, vector<8x128xf32>, vector<8x128xf32> -> vector<24x128xf32>
    %c0_5 = arith.constant 0 : index
    %c0_6 = arith.constant 0 : index
    %9 = vector.load %arg4[%c0_5, %c0_6] : memref<8x24xf32, #tpu.memory_space<vmem>>, vector<8x24xf32>
    %cst = arith.constant dense<0.000000e+00> : vector<8x128xf32>
    %10 = tpu.matmul %9, %8, %cst {dimension_numbers = #tpu.dot_dimension_numbers<[1], [0], [0], [1], [0, 0, 1, 1], [], []>} : vector<8x24xf32>, vector<24x128xf32>, vector<8x128xf32> -> vector<8x128xf32>
    %c0_7 = arith.constant 0 : index
    %c0_8 = arith.constant 0 : index
    %11 = vector.load %arg5[%c0_7, %c0_8] : memref<8x1xf32, #tpu.memory_space<vmem>>, vector<8x1xf32>
    %12 = vector.broadcast %11 : vector<8x1xf32> to vector<8x128xf32>
    %13 = arith.addf %10, %12 : vector<8x128xf32>
    %c0_9 = arith.constant 0 : index
    %c0_10 = arith.constant 0 : index
    %c0_11 = arith.constant 0 : index
    %14 = vector.load %arg6[%c0_9, %c0_10, %c0_11] : memref<1x8x128xf32, #tpu.memory_space<vmem>>, vector<1x8x128xf32>
    %15 = vector.shape_cast %14 : vector<1x8x128xf32> to vector<8x128xf32>
    %16 = vector.shape_cast %13 : vector<8x128xf32> to vector<1x8x128xf32>
    tpu.vector_store %arg6[%c0_9, %c0_10, %c0_11], %16 {strides = array<i32>} : memref<1x8x128xf32, #tpu.memory_space<vmem>>, vector<1x8x128xf32>,
    return
  }
  func.func @transform_0(%arg0: i32, %arg1: i32) -> (i32, i32, i32) {
    %c0_i32 = arith.constant 0 : i32
    %c0_i32_0 = arith.constant 0 : i32
    return %arg0, %c0_i32, %arg1 : i32, i32, i32
  }
  func.func @transform_1(%arg0: i32, %arg1: i32) -> (i32, i32, i32) {
    %c1_i32 = arith.constant 1 : i32
    %0 = arith.addi %arg1, %c1_i32 : i32
    %c1_i32_0 = arith.constant 1 : i32
    %1 = arith.muli %0, %c1_i32_0 : i32
    %c0_i32 = arith.constant 0 : i32
    %c0_i32_1 = arith.constant 0 : i32
    return %arg0, %c0_i32, %1 : i32, i32, i32
  }
  func.func @transform_2(%arg0: i32, %arg1: i32) -> (i32, i32) {
    %c0_i32 = arith.constant 0 : i32
    %c0_i32_0 = arith.constant 0 : i32
    %c0_i32_1 = arith.constant 0 : i32
    return %c0_i32, %c0_i32_0 : i32, i32
  }
  func.func @transform_3(%arg0: i32, %arg1: i32) -> (i32, i32) {
    %c0_i32 = arith.constant 0 : i32
    %c0_i32_0 = arith.constant 0 : i32
    %c0_i32_1 = arith.constant 0 : i32
    return %c0_i32, %c0_i32_0 : i32, i32
  }
  func.func @transform_4(%arg0: i32, %arg1: i32) -> (i32, i32, i32) {
    %c0_i32 = arith.constant 0 : i32
    %c0_i32_0 = arith.constant 0 : i32
    return %arg0, %c0_i32, %arg1 : i32, i32, i32
  }
}

module attributes {stable_mosaic.version = 11 : i64} {
  func.func @_conv1d_kernel(%arg0: i32, %arg1: i32, %arg2: memref<1x8x128xf32, #tpu.memory_space<vmem>>, %arg3: memref<1x8x128xf32, #tpu.memory_space<vmem>>, %arg4: memref<8x24xf32, #tpu.memory_space<vmem>>, %arg5: memref<8x1xf32, #tpu.memory_space<vmem>>, %arg6: memref<1x8x128xf32, #tpu.memory_space<vmem>>) attributes {dimension_semantics = [#tpu.dimension_semantics<parallel>, #tpu.dimension_semantics<parallel>], iteration_bounds = array<i64: 2, 1>, scalar_prefetch = 0 : i64, scratch_operands = 0 : i64, tpu.core_type = #tpu.core_type<tc>, window_params = [{transform_indices = @transform_0, window_bounds = array<i64: 1, 8, 128>}, {transform_indices = @transform_1, window_bounds = array<i64: 1, 8, 128>}, {pipeline_mode = #tpu.pipeline_mode<synchronous>, transform_indices = @transform_2, window_bounds = array<i64: 8, 24>}, {pipeline_mode = #tpu.pipeline_mode<synchronous>, transform_indices = @transform_3, window_bounds = array<i64: 8, 1>}, {transform_indices = @transform_4, window_bounds = array<i64: 1, 8, 128>}]} {
    %c0 = arith.constant 0 : index
    %c0_0 = arith.constant 0 : index
    %c0_1 = arith.constant 0 : index
    %0 = vector.load %arg2[%c0, %c0_0, %c0_1] : memref<1x8x128xf32, #tpu.memory_space<vmem>>, vector<1x8x128xf32>
    %1 = vector.shape_cast %0 : vector<1x8x128xf32> to vector<8x128xf32>
    %c0_2 = arith.constant 0 : index
    %c0_3 = arith.constant 0 : index
    %c0_4 = arith.constant 0 : index
    %2 = vector.load %arg3[%c0_2, %c0_3, %c0_4] : memref<1x8x128xf32, #tpu.memory_space<vmem>>, vector<1x8x128xf32>
    %3 = vector.shape_cast %2 : vector<1x8x128xf32> to vector<8x128xf32>
    %4 = tpu.concatenate %1, %3 in 1 : vector<8x128xf32>, vector<8x128xf32> -> vector<8x256xf32>
    %5 = vector.extract_strided_slice %4 {offsets = [0, 0], sizes = [8, 128], strides = [1, 1]} : vector<8x256xf32> to vector<8x128xf32>
    %6 = vector.extract_strided_slice %4 {offsets = [0, 2], sizes = [8, 128], strides = [1, 1]} : vector<8x256xf32> to vector<8x128xf32>
    %7 = vector.extract_strided_slice %4 {offsets = [0, 4], sizes = [8, 128], strides = [1, 1]} : vector<8x256xf32> to vector<8x128xf32>
    %8 = tpu.concatenate %5, %6, %7 in 0 : vector<8x128xf32>, vector<8x128xf32>, vector<8x128xf32> -> vector<24x128xf32>
    %c0_5 = arith.constant 0 : index
    %c0_6 = arith.constant 0 : index
    %9 = vector.load %arg4[%c0_5, %c0_6] : memref<8x24xf32, #tpu.memory_space<vmem>>, vector<8x24xf32>
    %cst = arith.constant dense<0.000000e+00> : vector<8x128xf32>
    %10 = tpu.matmul %9, %8, %cst {dimension_numbers = #tpu.dot_dimension_numbers<[1], [0], [0], [1], [0, 0, 1, 1], [], []>} : vector<8x24xf32>, vector<24x128xf32>, vector<8x128xf32> -> vector<8x128xf32>
    %c0_7 = arith.constant 0 : index
    %c0_8 = arith.constant 0 : index
    %11 = vector.load %arg5[%c0_7, %c0_8] : memref<8x1xf32, #tpu.memory_space<vmem>>, vector<8x1xf32>
    %12 = vector.broadcast %11 : vector<8x1xf32> to vector<8x128xf32>
    %13 = arith.addf %10, %12 : vector<8x128xf32>
    %c0_9 = arith.constant 0 : index
    %c0_10 = arith.constant 0 : index
    %c0_11 = arith.constant 0 : index
    %14 = vector.load %arg6[%c0_9, %c0_10, %c0_11] : memref<1x8x128xf32, #tpu.memory_space<vmem>>, vector<1x8x128xf32>
    %15 = vector.shape_cast %14 : vector<1x8x128xf32> to vector<8x128xf32>
    %16 = vector.shape_cast %13 : vector<8x128xf32> to vector<1x8x128xf32>
    tpu.vector_store %arg6[%c0_9, %c0_10, %c0_11], %16 {strides = array<i32>} : memref<1x8x128xf32, #tpu.memory_space<vmem>>, vector<1x8x128xf32>,
    return
  }
  func.func @transform_0(%arg0: i32, %arg1: i32) -> (i32, i32, i32) {
    %c0_i32 = arith.constant 0 : i32
    %c0_i32_0 = arith.constant 0 : i32
    return %arg0, %c0_i32, %arg1 : i32, i32, i32
  }
  func.func @transform_1(%arg0: i32, %arg1: i32) -> (i32, i32, i32) {
    %c1_i32 = arith.constant 1 : i32
    %0 = arith.addi %arg1, %c1_i32 : i32
    %c1_i32_0 = arith.constant 1 : i32
    %1 = arith.muli %0, %c1_i32_0 : i32
    %c0_i32 = arith.constant 0 : i32
    %c0_i32_1 = arith.constant 0 : i32
    return %arg0, %c0_i32, %1 : i32, i32, i32
  }
  func.func @transform_2(%arg0: i32, %arg1: i32) -> (i32, i32) {
    %c0_i32 = arith.constant 0 : i32
    %c0_i32_0 = arith.constant 0 : i32
    %c0_i32_1 = arith.constant 0 : i32
    return %c0_i32, %c0_i32_0 : i32, i32
  }
  func.func @transform_3(%arg0: i32, %arg1: i32) -> (i32, i32) {
    %c0_i32 = arith.constant 0 : i32
    %c0_i32_0 = arith.constant 0 : i32
    %c0_i32_1 = arith.constant 0 : i32
    return %c0_i32, %c0_i32_0 : i32, i32
  }
  func.func @transform_4(%arg0: i32, %arg1: i32) -> (i32, i32, i32) {
    %c0_i32 = arith.constant 0 : i32
    %c0_i32_0 = arith.constant 0 : i32
    return %arg0, %c0_i32, %arg1 : i32, i32, i32
  }
}

</mosaic_0001>

<llo_original>
// kernel: tpu_custom_call.1
$region0: #{tpu_custom_call.1}
  #allocation0 [shape = 'u32[]', space=smem, size = 0x4, offset = 0x4, fixed_abs, tag = 'smem constant byte address 0x4 - core index']
  #allocation1 [shape = 'u32[144,128]{1,0:T(1,128)}', space=vmem, size = 0x12000, scoped, tag = 'internal scratch']
  %s0 = inlined_call_operand.hbm [shape: f32[2,8,256], index: 0, kind: input, shape index: {}]
  %s1 = inlined_call_operand.hbm [shape: f32[2,8,256], index: 1, kind: input, shape index: {}]
  %s2 = inlined_call_operand.vmem [shape: f32[8,24], index: 2, kind: input, shape index: {}]
  %s3 = inlined_call_operand.vmem [shape: f32[8,1], index: 3, kind: input, shape index: {}]
  %s4 = inlined_call_operand.vmem [shape: f32[2,6,16], index: 4, kind: output, shape index: {}]
  %s5 = sld [smem:[#allocation0]]
  $region57: #{tpu_custom_call.1} parent=0
    _
  %s7 = ssub.s32 1, %s5
  %s8 = scalar_select 0, %s7, %s5
  $region1: #{tpu_custom_call.1} parent=0
    #allocation2 [shape = 'u8[8192]{0}', space=vmem, size = 0x2000, scoped, tag = 'input window, operand 0']
    #allocation3 [shape = 's32[2]{0}', space=sflag, size = 0x8, scoped, tag = 'scoped memory for tpu_custom_call.1']
    #allocation4 [shape = 'u8[8192]{0}', space=vmem, size = 0x2000, scoped, tag = 'input window, operand 1']
    #allocation5 [shape = 's32[2]{0}', space=sflag, size = 0x8, scoped, tag = 'scoped memory for tpu_custom_call.1']
    %9 = vsyncpa [#allocation3], 0
    %s10 = scalar_lea.sflag [#allocation3], 1
    %11 = vsyncpa %s10, 0
    %12 = vsyncpa [#allocation5], 0
    %s13 = scalar_lea.sflag [#allocation5], 1
    %14 = vsyncpa %s13, 0
    loop: start=0, step=1, limit=4
    $region2: #{tpu_custom_call.1} parent=1 // loop_pre_header
      _
    $region3: #{tpu_custom_call.1} parent=1 // loop_header
      %s16 = sphi 0, %s20
      %p17 = scmp.ge.s32.totalorder %s16, 4
      %s23 = sphi 0, %s35
      %s24 = sphi 0, %s31
      %s25 = sphi 0, %s23
      %s26 = sphi 0, %s24
      %s27 = sphi 0, %s25
      %s28 = sphi 0, %s26
      %s40 = sphi 0, %s42
      %s43 = sphi 0, %s40
      %s44 = sphi 0, %s43
      %s60 = sphi 0, %s44
      %s70 = sphi 0, %s72
      %s73 = sphi 0, %s70
      %s74 = sphi 0, %s73
      %s90 = sphi 0, %s74
      %s94 = sphi 0, %s94
      %s96 = sphi 0, %s94
      %s97 = sphi 0, %s96
      %s111 = sphi 0, %s97
      %s115 = sphi 0, %s115
      %s117 = sphi 0, %s115
      %s118 = sphi 0, %s117
      %s132 = sphi 0, %s118
      %s140 = sphi 0, %s142
      %s143 = sphi 0, %s140
      %s144 = sphi 0, %s143
      %s160 = sphi 0, %s144
    $region4: #{tpu_custom_call.1} parent=1 // loop_header_branch
      %19 = sbr.rel (%p17) target = $region8
    $region5: #{tpu_custom_call.1} parent=1 // loop_body
      %s21 = ssub.s32 %s16, 1
      %s22 = ssub.s32 %s16, 2
      %s29 = sadd.s32 1, %s24
      %p30 = scmp.ge.s32.totalorder %s29, 1
      %s31 = scalar_select %p30, 0, %s29
      %s32 = sadd.s32 1, %s23
      %s33 = scalar_select %p30, %s32, %s23
      %p34 = scmp.ge.s32.totalorder %s33, 2
      %s35 = scalar_select %p34, 0, %s33
      %s36 = ssub.s32 %s23, %s35
      %s37 = ssub.s32 %s24, %s31
      %s38 = sor.u32 %s36, %s37
      %p39 = scmp.eq.s32.totalorder %s38, 0
      %s41 = sadd.s32 %s40, 1
      %s42 = scalar_select %p39, %s40, %s41
      %p45 = pneg %p39
      %p46 = scmp.eq.s32.totalorder %s16, 1
      %p47 = por %p45, %p46
      %p48 = scmp.ne.s32.totalorder %s40, %s43
      %p49 = scmp.eq.s32.totalorder %s16, 0
      %p50 = por %p48, %p49
      %p51 = scmp.ne.s32.totalorder %s40, %s43
      %p52 = scmp.eq.s32.totalorder %s21, 1
      %p53 = por %p51, %p52
      %p54 = scmp.ne.s32.totalorder %s43, %s44
      %p55 = scmp.eq.s32.totalorder %s21, 0
      %p56 = por %p54, %p55
      %p57 = scmp.ne.s32.totalorder %s43, %s44
      %p58 = scmp.eq.s32.totalorder %s22, 1
      %p59 = por %p57, %p58
      %p61 = scmp.ne.s32.totalorder %s44, %s60
      %p62 = scmp.eq.s32.totalorder %s22, 0
      %p63 = por %p61, %p62
      %s64 = sadd.s32 %s24, 1
      %s65 = sadd.s32 %s31, 1
      %s66 = ssub.s32 %s23, %s35
      %s67 = ssub.s32 %s64, %s65
      %s68 = sor.u32 %s66, %s67
      %p69 = scmp.eq.s32.totalorder %s68, 0
      %s71 = sadd.s32 %s70, 1
      %s72 = scalar_select %p69, %s70, %s71
      %p75 = pneg %p69
      %p76 = scmp.eq.s32.totalorder %s16, 1
      %p77 = por %p75, %p76
      %p78 = scmp.ne.s32.totalorder %s70, %s73
      %p79 = scmp.eq.s32.totalorder %s16, 0
      %p80 = por %p78, %p79
      %p81 = scmp.ne.s32.totalorder %s70, %s73
      %p82 = scmp.eq.s32.totalorder %s21, 1
      %p83 = por %p81, %p82
      %p84 = scmp.ne.s32.totalorder %s73, %s74
      %p85 = scmp.eq.s32.totalorder %s21, 0
      %p86 = por %p84, %p85
      %p87 = scmp.ne.s32.totalorder %s73, %s74
      %p88 = scmp.eq.s32.totalorder %s22, 1
      %p89 = por %p87, %p88
      %p91 = scmp.ne.s32.totalorder %s74, %s90
      %p92 = scmp.eq.s32.totalorder %s22, 0
      %p93 = por %p91, %p92
      %s95 = sadd.s32 %s94, 1
      %p98 = scmp.eq.s32.totalorder %s16, 1
      %p99 = scmp.ne.s32.totalorder %s94, %s96
      %p100 = scmp.eq.s32.totalorder %s16, 0
      %p101 = por %p99, %p100
      %p102 = scmp.ne.s32.totalorder %s94, %s96
      %p103 = scmp.eq.s32.totalorder %s21, 1
      %p104 = por %p102, %p103
      %p105 = scmp.ne.s32.totalorder %s96, %s97
      %p106 = scmp.eq.s32.totalorder %s21, 0
      %p107 = por %p105, %p106
      %p108 = scmp.ne.s32.totalorder %s96, %s97
      %p109 = scmp.eq.s32.totalorder %s22, 1
      %p110 = por %p108, %p109
      %p112 = scmp.ne.s32.totalorder %s97, %s111
      %p113 = scmp.eq.s32.totalorder %s22, 0
      %p114 = por %p112, %p113
      %s116 = sadd.s32 %s115, 1
      %p119 = scmp.eq.s32.totalorder %s16, 1
      %p120 = scmp.ne.s32.totalorder %s115, %s117
      %p121 = scmp.eq.s32.totalorder %s16, 0
      %p122 = por %p120, %p121
      %p123 = scmp.ne.s32.totalorder %s115, %s117
      %p124 = scmp.eq.s32.totalorder %s21, 1
      %p125 = por %p123, %p124
      %p126 = scmp.ne.s32.totalorder %s117, %s118
      %p127 = scmp.eq.s32.totalorder %s21, 0
      %p128 = por %p126, %p127
      %p129 = scmp.ne.s32.totalorder %s117, %s118
      %p130 = scmp.eq.s32.totalorder %s22, 1
      %p131 = por %p129, %p130
      %p133 = scmp.ne.s32.totalorder %s118, %s132
      %p134 = scmp.eq.s32.totalorder %s22, 0
      %p135 = por %p133, %p134
      %s136 = ssub.s32 %s23, %s35
      %s137 = ssub.s32 %s24, %s31
      %s138 = sor.u32 %s136, %s137
      %p139 = scmp.eq.s32.totalorder %s138, 0
      %s141 = sadd.s32 %s140, 1
      %s142 = scalar_select %p139, %s140, %s141
      %p145 = pneg %p139
      %p146 = scmp.eq.s32.totalorder %s16, 1
      %p147 = por %p145, %p146
      %p148 = scmp.ne.s32.totalorder %s140, %s143
      %p149 = scmp.eq.s32.totalorder %s16, 0
      %p150 = por %p148, %p149
      %p151 = scmp.ne.s32.totalorder %s140, %s143
      %p152 = scmp.eq.s32.totalorder %s21, 1
      %p153 = por %p151, %p152
      %p154 = scmp.ne.s32.totalorder %s143, %s144
      %p155 = scmp.eq.s32.totalorder %s21, 0
      %p156 = por %p154, %p155
      %p157 = scmp.ne.s32.totalorder %s143, %s144
      %p158 = scmp.eq.s32.totalorder %s22, 1
      %p159 = por %p157, %p158
      %p161 = scmp.ne.s32.totalorder %s144, %s160
      %p162 = scmp.eq.s32.totalorder %s22, 0
      %p163 = por %p161, %p162
      %p164 = scmp.le.s32.totalorder 1, %s16
      %p165 = scmp.lt.s32.totalorder %s16, 3
      %p166 = pnand %p164, %p165
      %p167 = pneg %p166
      // Predicated region
      $region9: #{tpu_custom_call.1} parent=5 // pred_check
        _
      $region10: #{tpu_custom_call.1} parent=5 // pred_check_branch
        %169 = sbr.rel (%p166) target = $region12
      $region11: #{tpu_custom_call.1} parent=5 // pred_region
        %s170 = ssub.s32 %s16, 1
        // Predicated region
        $region13: #{tpu_custom_call.1} parent=11 // pred_check
          %p171 = pneg %p107
        $region14: #{tpu_custom_call.1} parent=11 // pred_check_branch
          %173 = sbr.rel (%p171) target = $region16
        $region15: #{tpu_custom_call.1} parent=11 // pred_region
          _
        $region16: #{tpu_custom_call.1} parent=11 // pred_fallthru
          _
        // Predicated region
        $region17: #{tpu_custom_call.1} parent=11 // pred_check
          %p174 = pneg %p128
        $region18: #{tpu_custom_call.1} parent=11 // pred_check_branch
          %176 = sbr.rel (%p174) target = $region20
        $region19: #{tpu_custom_call.1} parent=11 // pred_region
          _
        $region20: #{tpu_custom_call.1} parent=11 // pred_fallthru
          _
      $region12: #{tpu_custom_call.1} parent=5 // pred_fallthru
        _
      %p177 = scmp.lt.s32.totalorder %s16, 2
      // Predicated region
      $region21: #{tpu_custom_call.1} parent=5 // pred_check
        %p178 = pneg %p177
      $region22: #{tpu_custom_call.1} parent=5 // pred_check_branch
        %180 = sbr.rel (%p178) target = $region24
      $region23: #{tpu_custom_call.1} parent=5 // pred_region
        // Predicated region
        $region25: #{tpu_custom_call.1} parent=23 // pred_check
          %p181 = pneg %p50
        $region26: #{tpu_custom_call.1} parent=23 // pred_check_branch
          %183 = sbr.rel (%p181) target = $region28
        $region27: #{tpu_custom_call.1} parent=23 // pred_region
          %s184 = sand.u32 %s40, 1
          %s185 = scalar_lea.sflag [#allocation3], %s184
          %s186 = sand.u32 %s40, 1
          %s187 = smul.addr %s186, 8
          %s188 = scalar_lea.vmem [#allocation2], %s187
          %s190 = ssub.s32 128, 128
          %191 = vsyncadd %s185, %s190
          %s192 = smul.addr %s23, 2
          %s193 = sadd.s32 %s24, %s192
          %s194 = smul.addr %s193, 128
          %s195 = scalar_lea.hbm %s0, %s194
          %s197 = sshll.u32 %s188, 4
          %s198 = int_to_ptr.vmem [resolvable:$true] %s197
          %200 = dma.hbm_to_vmem [thread:$0]  %s195, 128, %s198, %s185
        $region28: #{tpu_custom_call.1} parent=23 // pred_fallthru
          _
        // Predicated region
        $region29: #{tpu_custom_call.1} parent=23 // pred_check
          %p201 = pneg %p80
        $region30: #{tpu_custom_call.1} parent=23 // pred_check_branch
          %203 = sbr.rel (%p201) target = $region32
        $region31: #{tpu_custom_call.1} parent=23 // pred_region
          %s204 = sand.u32 %s70, 1
          %s205 = scalar_lea.sflag [#allocation5], %s204
          %s206 = sand.u32 %s70, 1
          %s207 = smul.addr %s206, 8
          %s208 = scalar_lea.vmem [#allocation4], %s207
          %s209 = sadd.s32 %s24, 1
          %s211 = ssub.s32 128, 128
          %212 = vsyncadd %s205, %s211
          %s213 = smul.addr %s23, 2
          %s214 = sadd.s32 %s209, %s213
          %s215 = smul.addr %s214, 128
          %s216 = scalar_lea.hbm %s1, %s215
          %s218 = sshll.u32 %s208, 4
          %s219 = int_to_ptr.vmem [resolvable:$true] %s218
          %221 = dma.hbm_to_vmem [thread:$0]  %s216, 128, %s219, %s205
        $region32: #{tpu_custom_call.1} parent=23 // pred_fallthru
          _
      $region24: #{tpu_custom_call.1} parent=5 // pred_fallthru
        _
      %p222 = scmp.le.s32.totalorder 1, %s16
      %p223 = scmp.lt.s32.totalorder %s16, 3
      %p224 = pnand %p222, %p223
      %p225 = pneg %p224
      // Predicated region
      $region33: #{tpu_custom_call.1} parent=5 // pred_check
        _
      $region34: #{tpu_custom_call.1} parent=5 // pred_check_branch
        %227 = sbr.rel (%p224) target = $region36
      $region35: #{tpu_custom_call.1} parent=5 // pred_region
        %s228 = ssub.s32 %s16, 1
        %s229 = sand.u32 %s43, 1
        %s230 = scalar_lea.sflag [#allocation3], %s229
        %s231 = sand.u32 %s43, 1
        %s232 = smul.addr %s231, 8
        %s233 = scalar_lea.vmem [#allocation2], %s232
        // Predicated region
        $region37: #{tpu_custom_call.1} parent=35 // pred_check
          %p234 = pneg %p56
        $region38: #{tpu_custom_call.1} parent=35 // pred_check_branch
          %236 = sbr.rel (%p234) target = $region40
        $region39: #{tpu_custom_call.1} parent=35 // pred_region
          %237 = dma.done %s230, 128
        $region40: #{tpu_custom_call.1} parent=35 // pred_fallthru
          _
        %s238 = sand.u32 %s73, 1
        %s239 = scalar_lea.sflag [#allocation5], %s238
        %s240 = sand.u32 %s73, 1
        %s241 = smul.addr %s240, 8
        %s242 = scalar_lea.vmem [#allocation4], %s241
        // Predicated region
        $region41: #{tpu_custom_call.1} parent=35 // pred_check
          %p243 = pneg %p86
        $region42: #{tpu_custom_call.1} parent=35 // pred_check_branch
          %245 = sbr.rel (%p243) target = $region44
        $region43: #{tpu_custom_call.1} parent=35 // pred_region
          %246 = dma.done %s239, 128
        $region44: #{tpu_custom_call.1} parent=35 // pred_fallthru
          _
        %s247 = sand.u32 %s43, 1
        %s248 = scalar_lea.sflag [#allocation3], %s247
        %s249 = sand.u32 %s43, 1
        %s250 = smul.addr %s249, 8
        %s251 = scalar_lea.vmem [#allocation2], %s250
        %p252 = pneg %p56
        %p253 = pneg %p53
        %s254 = sand.u32 %s73, 1
        %s255 = scalar_lea.sflag [#allocation5], %s254
        %s256 = sand.u32 %s73, 1
        %s257 = smul.addr %s256, 8
        %s258 = scalar_lea.vmem [#allocation4], %s257
        %p259 = pneg %p86
        %p260 = pneg %p83
        %p261 = pneg %p107
        %p262 = pneg %p104
        %p263 = pneg %p128
        %p264 = pneg %p125
        %p265 = pneg %p156
        %p266 = pneg %p153
        %p267 = scmp.lt.s32.totalorder %s25, 1
        %s268 = scalar_select %p267, %s25, 1
        %p269 = scmp.lt.s32.totalorder %s26, 0
        %s270 = scalar_select %p269, %s26, 0
        %s271 = sadd.s32 %s270, %s268
        %s272 = smul.addr %s271, 8
        %s273 = scalar_lea.vmem %s4, %s272
        %s274 = sadd.s32 %s26, 1
        %p275 = scmp.lt.s32.totalorder %s25, 1
        %s276 = scalar_select %p275, %s25, 1
        %p277 = scmp.lt.s32.totalorder %s26, 0
        %s278 = scalar_select %p277, %s26, 0
        %s279 = sadd.s32 %s278, %s276
        %s280 = smul.addr %s279, 8
        %s281 = scalar_lea.vmem %s4, %s280
        %v282 = vld [vmem:[%s233] sm:$0xff]
        %v283 = vld [vmem:[%s242] sm:$0xff]
        %286 = vrot.lane.b32.xlu0 %v282, 126
        %v287 = vpop.permute.xlu0 %286
        %288 = vrot.lane.b32.xlu0 %v283, 126
        %v289 = vpop.permute.xlu0 %288
        %vm290 = vcmask 1031168
        %v291 = vsel %vm290, %v287, %v289
        %293 = vrot.lane.b32.xlu0 %v282, 124
        %v294 = vpop.permute.xlu0 %293
        %295 = vrot.lane.b32.xlu0 %v283, 124
        %v296 = vpop.permute.xlu0 %295
        %vm297 = vcmask 1014784
        %v298 = vsel %vm297, %v294, %v296
        %v300 = vld [vmem:[%s2] sm:$0xff]
        %v301 = vld [vmem:[%s3] sm:$0xff]
        %303 = vset.pattern.permute.xlu0 0
        %304 = vperm.xlu0 %303, %v301
        %v305 = vpop.permute.xlu0 %304
        %vm307 = vcmask 195584
        %v309 = vsel %vm307, %v300, 0
        %311 = vmatprep.subr.mxu0 0.0
        %312 = vmatpush1.msra.mxu0 %v282
        %313 = vmatprep.subr.mxu0 0.0
        %314 = vmatpush1.msra.mxu0 %v291
        %315 = vmatprep.subr.mxu0 0.0
        %316 = vmatpush1.msra.mxu0 %v298
        %317 = vmatprep.subr.mxu0 0.0
        %318 = vmatpush1.msra.mxu0 0.0
        %319 = vmatprep.subr.mxu0 0.0
        %320 = vmatpush1.msra.mxu0 0.0
        %321 = vmatprep.subr.mxu0 0.0
        %322 = vmatpush1.msra.mxu0 0.0
        %323 = vmatprep.subr.mxu0 0.0
        %324 = vmatpush1.msra.mxu0 0.0
        %325 = vmatprep.subr.mxu0 0.0
        %326 = vmatpush1.msra.mxu0 0.0
        %327 = vmatprep.subr.mxu0 0.0
        %328 = vmatpush1.msra.mxu0 0.0
        %329 = vmatprep.subr.mxu0 0.0
        %330 = vmatpush1.msra.mxu0 0.0
        %331 = vmatprep.subr.mxu0 0.0
        %332 = vmatpush1.msra.mxu0 0.0
        %333 = vmatprep.subr.mxu0 0.0
        %334 = vmatpush1.msra.mxu0 0.0
        %335 = vmatprep.subr.mxu0 0.0
        %336 = vmatpush1.msra.mxu0 0.0
        %337 = vmatprep.subr.mxu0 0.0
        %338 = vmatpush1.msra.mxu0 0.0
        %339 = vmatprep.subr.mxu0 0.0
        %340 = vmatpush1.msra.mxu0 0.0
        %341 = vmatprep.subr.mxu0 0.0
        %342 = vmatpush1.msra.mxu0 0.0
        %343 = vmatprep.subr.mxu0 0.0
        %344 = vmatpush1.msra.mxu0 0.0
        %345 = vmatprep.subr.mxu0 0.0
        %346 = vmatpush1.msra.mxu0 0.0
        %347 = vmatprep.subr.mxu0 0.0
        %348 = vmatpush1.msra.mxu0 0.0
        %349 = vmatprep.subr.mxu0 0.0
        %350 = vmatpush1.msra.mxu0 0.0
        %351 = vmatprep.subr.mxu0 0.0
        %352 = vmatpush1.msra.mxu0 0.0
        %353 = vmatprep.subr.mxu0 0.0
        %354 = vmatpush1.msra.mxu0 0.0
        %355 = vmatprep.subr.mxu0 0.0
        %356 = vmatpush1.msra.mxu0 0.0
        %357 = vmatprep.subr.mxu0 0.0
        %358 = vmatpush1.msra.mxu0 0.0
        %359 = vmatprep.subr.mxu0 0.0
        %360 = vmatpush1.msra.mxu0 0.0
        %361 = vmatprep.subr.mxu0 0.0
        %362 = vmatpush1.msra.mxu0 0.0
        %363 = vmatprep.subr.mxu0 0.0
        %364 = vmatpush1.msra.mxu0 0.0
        %365 = vmatprep.subr.mxu0 0.0
        %366 = vmatpush1.msra.mxu0 0.0
        %367 = vmatprep.subr.mxu0 0.0
        %368 = vmatpush1.msra.mxu0 0.0
        %369 = vmatprep.subr.mxu0 0.0
        %370 = vmatpush1.msra.mxu0 0.0
        %371 = vmatprep.subr.mxu0 0.0
        %372 = vmatpush1.msra.mxu0 0.0
        %373 = vmatprep.subr.mxu0 0.0
        %374 = vmatpush1.msra.mxu0 0.0
        %375 = vmatprep.mubr.f32.mxu0 0.0
        %376 = vmatmul.mubr.f32.gmra.mrb[0].mxu0 %v309
        %v377 = vpop.f32.mrb[0].mxu0
        %v378 = vadd.f32 %v305, %v377
        %v379 = vpop.f32.mrb[0].mxu0
        %380 = vdwg.mxu0
        %381 = vst [vmem:[%s281] sm:$0xff] %v378
        %p382 = scmp.lt.s32.totalorder %s25, 1
        %s383 = scalar_select %p382, %s25, 1
        %p384 = scmp.lt.s32.totalorder %s26, 0
        %s385 = scalar_select %p384, %s26, 0
        %s386 = sadd.s32 %s385, %s383
        %s387 = smul.addr %s386, 8
        %s388 = scalar_lea.vmem %s4, %s387
        // Predicated region
        $region45: #{tpu_custom_call.1} parent=35 // pred_check
          %p389 = pneg %p153
        $region46: #{tpu_custom_call.1} parent=35 // pred_check_branch
          %391 = sbr.rel (%p389) target = $region48
        $region47: #{tpu_custom_call.1} parent=35 // pred_region
          _
        $region48: #{tpu_custom_call.1} parent=35 // pred_fallthru
          _
      $region36: #{tpu_custom_call.1} parent=5 // pred_fallthru
        _
      %p392 = scmp.le.s32.totalorder 2, %s16
      // Predicated region
      $region49: #{tpu_custom_call.1} parent=5 // pred_check
        %p393 = pneg %p392
      $region50: #{tpu_custom_call.1} parent=5 // pred_check_branch
        %395 = sbr.rel (%p393) target = $region52
      $region51: #{tpu_custom_call.1} parent=5 // pred_region
        %s396 = ssub.s32 %s16, 2
        // Predicated region
        $region53: #{tpu_custom_call.1} parent=51 // pred_check
          %p397 = pneg %p159
        $region54: #{tpu_custom_call.1} parent=51 // pred_check_branch
          %399 = sbr.rel (%p397) target = $region56
        $region55: #{tpu_custom_call.1} parent=51 // pred_region
          %p400 = scmp.lt.s32.totalorder %s27, 1
          %s401 = scalar_select %p400, %s27, 1
          %p402 = scmp.lt.s32.totalorder %s28, 0
          %s403 = scalar_select %p402, %s28, 0
          %s404 = sadd.s32 %s403, %s401
          %s405 = smul.addr %s404, 8
          %s406 = scalar_lea.vmem %s4, %s405
        $region56: #{tpu_custom_call.1} parent=51 // pred_fallthru
          _
      $region52: #{tpu_custom_call.1} parent=5 // pred_fallthru
        _
    $region6: #{tpu_custom_call.1} parent=1 // loop_footer
      %s20 = sadd.s32 1, %s16
    $region7: #{tpu_custom_call.1} parent=1 // loop_footer_branch
      %15 = sbr.rel target = $region3
    $region8: #{tpu_custom_call.1} parent=1 // loop_exit
      _
    %407 = vsyncpa [#allocation3], 1
    %s408 = scalar_lea.sflag [#allocation3], 1
    %409 = vsyncpa %s408, 1
    %410 = vsyncpa [#allocation5], 1
    %s411 = scalar_lea.sflag [#allocation5], 1
    %412 = vsyncpa %s411, 1

// kernel: tpu_custom_call.1
$region0: #{tpu_custom_call.1}
  #allocation0 [shape = 'u32[]', space=smem, size = 0x4, offset = 0x4, fixed_abs, tag = 'smem constant byte address 0x4 - core index']
  #allocation1 [shape = 'u32[144,128]{1,0:T(1,128)}', space=vmem, size = 0x12000, scoped, tag = 'internal scratch']
  %s0 = inlined_call_operand.hbm [shape: f32[2,8,256], index: 0, kind: input, shape index: {}]
  %s1 = inlined_call_operand.hbm [shape: f32[2,8,256], index: 1, kind: input, shape index: {}]
  %s2 = inlined_call_operand.vmem [shape: f32[8,24], index: 2, kind: input, shape index: {}]
  %s3 = inlined_call_operand.vmem [shape: f32[8,1], index: 3, kind: input, shape index: {}]
  %s4 = inlined_call_operand.hbm [shape: f32[2,8,128], index: 4, kind: output, shape index: {}]
  %s5 = sld [smem:[#allocation0]]
  $region57: #{tpu_custom_call.1} parent=0
    _
  %s7 = ssub.s32 1, %s5
  %s8 = scalar_select 0, %s7, %s5
  $region1: #{tpu_custom_call.1} parent=0
    #allocation2 [shape = 'u8[8192]{0}', space=vmem, size = 0x2000, scoped, tag = 'input window, operand 0']
    #allocation3 [shape = 's32[2]{0}', space=sflag, size = 0x8, scoped, tag = 'scoped memory for tpu_custom_call.1']
    #allocation4 [shape = 's32[2]{0}', space=sflag, size = 0x8, scoped, tag = 'scoped memory for tpu_custom_call.1']
    #allocation5 [shape = 'u8[8192]{0}', space=vmem, size = 0x2000, scoped, tag = 'input window, operand 1']
    #allocation6 [shape = 's32[2]{0}', space=sflag, size = 0x8, scoped, tag = 'scoped memory for tpu_custom_call.1']
    #allocation7 [shape = 'u8[8192]{0}', space=vmem, size = 0x2000, scoped, tag = 'output window, operand 0']
    %9 = vsyncpa [#allocation3], 0
    %s10 = scalar_lea.sflag [#allocation3], 1
    %11 = vsyncpa %s10, 0
    %12 = vsyncpa [#allocation6], 0
    %s13 = scalar_lea.sflag [#allocation6], 1
    %14 = vsyncpa %s13, 0
    %15 = vsyncpa [#allocation4], 0
    %s16 = scalar_lea.sflag [#allocation4], 1
    %17 = vsyncpa %s16, 0
    loop: start=0, step=1, limit=4
    $region2: #{tpu_custom_call.1} parent=1 // loop_pre_header
      _
    $region3: #{tpu_custom_call.1} parent=1 // loop_header
      %s19 = sphi 0, %s23
      %p20 = scmp.ge.s32.totalorder %s19, 4
      %s26 = sphi 0, %s38
      %s27 = sphi 0, %s34
      %s28 = sphi 0, %s26
      %s29 = sphi 0, %s27
      %s30 = sphi 0, %s28
      %s31 = sphi 0, %s29
      %s43 = sphi 0, %s45
      %s46 = sphi 0, %s43
      %s47 = sphi 0, %s46
      %s63 = sphi 0, %s47
      %s73 = sphi 0, %s75
      %s76 = sphi 0, %s73
      %s77 = sphi 0, %s76
      %s93 = sphi 0, %s77
      %s97 = sphi 0, %s97
      %s99 = sphi 0, %s97
      %s100 = sphi 0, %s99
      %s114 = sphi 0, %s100
      %s118 = sphi 0, %s118
      %s120 = sphi 0, %s118
      %s121 = sphi 0, %s120
      %s135 = sphi 0, %s121
      %s143 = sphi 0, %s145
      %s146 = sphi 0, %s143
      %s147 = sphi 0, %s146
      %s163 = sphi 0, %s147
    $region4: #{tpu_custom_call.1} parent=1 // loop_header_branch
      %22 = sbr.rel (%p20) target = $region8
    $region5: #{tpu_custom_call.1} parent=1 // loop_body
      %s24 = ssub.s32 %s19, 1
      %s25 = ssub.s32 %s19, 2
      %s32 = sadd.s32 1, %s27
      %p33 = scmp.ge.s32.totalorder %s32, 1
      %s34 = scalar_select %p33, 0, %s32
      %s35 = sadd.s32 1, %s26
      %s36 = scalar_select %p33, %s35, %s26
      %p37 = scmp.ge.s32.totalorder %s36, 2
      %s38 = scalar_select %p37, 0, %s36
      %s39 = ssub.s32 %s26, %s38
      %s40 = ssub.s32 %s27, %s34
      %s41 = sor.u32 %s39, %s40
      %p42 = scmp.eq.s32.totalorder %s41, 0
      %s44 = sadd.s32 %s43, 1
      %s45 = scalar_select %p42, %s43, %s44
      %p48 = pneg %p42
      %p49 = scmp.eq.s32.totalorder %s19, 1
      %p50 = por %p48, %p49
      %p51 = scmp.ne.s32.totalorder %s43, %s46
      %p52 = scmp.eq.s32.totalorder %s19, 0
      %p53 = por %p51, %p52
      %p54 = scmp.ne.s32.totalorder %s43, %s46
      %p55 = scmp.eq.s32.totalorder %s24, 1
      %p56 = por %p54, %p55
      %p57 = scmp.ne.s32.totalorder %s46, %s47
      %p58 = scmp.eq.s32.totalorder %s24, 0
      %p59 = por %p57, %p58
      %p60 = scmp.ne.s32.totalorder %s46, %s47
      %p61 = scmp.eq.s32.totalorder %s25, 1
      %p62 = por %p60, %p61
      %p64 = scmp.ne.s32.totalorder %s47, %s63
      %p65 = scmp.eq.s32.totalorder %s25, 0
      %p66 = por %p64, %p65
      %s67 = sadd.s32 %s27, 1
      %s68 = sadd.s32 %s34, 1
      %s69 = ssub.s32 %s26, %s38
      %s70 = ssub.s32 %s67, %s68
      %s71 = sor.u32 %s69, %s70
      %p72 = scmp.eq.s32.totalorder %s71, 0
      %s74 = sadd.s32 %s73, 1
      %s75 = scalar_select %p72, %s73, %s74
      %p78 = pneg %p72
      %p79 = scmp.eq.s32.totalorder %s19, 1
      %p80 = por %p78, %p79
      %p81 = scmp.ne.s32.totalorder %s73, %s76
      %p82 = scmp.eq.s32.totalorder %s19, 0
      %p83 = por %p81, %p82
      %p84 = scmp.ne.s32.totalorder %s73, %s76
      %p85 = scmp.eq.s32.totalorder %s24, 1
      %p86 = por %p84, %p85
      %p87 = scmp.ne.s32.totalorder %s76, %s77
      %p88 = scmp.eq.s32.totalorder %s24, 0
      %p89 = por %p87, %p88
      %p90 = scmp.ne.s32.totalorder %s76, %s77
      %p91 = scmp.eq.s32.totalorder %s25, 1
      %p92 = por %p90, %p91
      %p94 = scmp.ne.s32.totalorder %s77, %s93
      %p95 = scmp.eq.s32.totalorder %s25, 0
      %p96 = por %p94, %p95
      %s98 = sadd.s32 %s97, 1
      %p101 = scmp.eq.s32.totalorder %s19, 1
      %p102 = scmp.ne.s32.totalorder %s97, %s99
      %p103 = scmp.eq.s32.totalorder %s19, 0
      %p104 = por %p102, %p103
      %p105 = scmp.ne.s32.totalorder %s97, %s99
      %p106 = scmp.eq.s32.totalorder %s24, 1
      %p107 = por %p105, %p106
      %p108 = scmp.ne.s32.totalorder %s99, %s100
      %p109 = scmp.eq.s32.totalorder %s24, 0
      %p110 = por %p108, %p109
      %p111 = scmp.ne.s32.totalorder %s99, %s100
      %p112 = scmp.eq.s32.totalorder %s25, 1
      %p113 = por %p111, %p112
      %p115 = scmp.ne.s32.totalorder %s100, %s114
      %p116 = scmp.eq.s32.totalorder %s25, 0
      %p117 = por %p115, %p116
      %s119 = sadd.s32 %s118, 1
      %p122 = scmp.eq.s32.totalorder %s19, 1
      %p123 = scmp.ne.s32.totalorder %s118, %s120
      %p124 = scmp.eq.s32.totalorder %s19, 0
      %p125 = por %p123, %p124
      %p126 = scmp.ne.s32.totalorder %s118, %s120
      %p127 = scmp.eq.s32.totalorder %s24, 1
      %p128 = por %p126, %p127
      %p129 = scmp.ne.s32.totalorder %s120, %s121
      %p130 = scmp.eq.s32.totalorder %s24, 0
      %p131 = por %p129, %p130
      %p132 = scmp.ne.s32.totalorder %s120, %s121
      %p133 = scmp.eq.s32.totalorder %s25, 1
      %p134 = por %p132, %p133
      %p136 = scmp.ne.s32.totalorder %s121, %s135
      %p137 = scmp.eq.s32.totalorder %s25, 0
      %p138 = por %p136, %p137
      %s139 = ssub.s32 %s26, %s38
      %s140 = ssub.s32 %s27, %s34
      %s141 = sor.u32 %s139, %s140
      %p142 = scmp.eq.s32.totalorder %s141, 0
      %s144 = sadd.s32 %s143, 1
      %s145 = scalar_select %p142, %s143, %s144
      %p148 = pneg %p142
      %p149 = scmp.eq.s32.totalorder %s19, 1
      %p150 = por %p148, %p149
      %p151 = scmp.ne.s32.totalorder %s143, %s146
      %p152 = scmp.eq.s32.totalorder %s19, 0
      %p153 = por %p151, %p152
      %p154 = scmp.ne.s32.totalorder %s143, %s146
      %p155 = scmp.eq.s32.totalorder %s24, 1
      %p156 = por %p154, %p155
      %p157 = scmp.ne.s32.totalorder %s146, %s147
      %p158 = scmp.eq.s32.totalorder %s24, 0
      %p159 = por %p157, %p158
      %p160 = scmp.ne.s32.totalorder %s146, %s147
      %p161 = scmp.eq.s32.totalorder %s25, 1
      %p162 = por %p160, %p161
      %p164 = scmp.ne.s32.totalorder %s147, %s163
      %p165 = scmp.eq.s32.totalorder %s25, 0
      %p166 = por %p164, %p165
      %p167 = scmp.le.s32.totalorder 1, %s19
      %p168 = scmp.lt.s32.totalorder %s19, 3
      %p169 = pnand %p167, %p168
      %p170 = pneg %p169
      // Predicated region
      $region9: #{tpu_custom_call.1} parent=5 // pred_check
        _
      $region10: #{tpu_custom_call.1} parent=5 // pred_check_branch
        %172 = sbr.rel (%p169) target = $region12
      $region11: #{tpu_custom_call.1} parent=5 // pred_region
        %s173 = ssub.s32 %s19, 1
        // Predicated region
        $region13: #{tpu_custom_call.1} parent=11 // pred_check
          %p174 = pneg %p110
        $region14: #{tpu_custom_call.1} parent=11 // pred_check_branch
          %176 = sbr.rel (%p174) target = $region16
        $region15: #{tpu_custom_call.1} parent=11 // pred_region
          _
        $region16: #{tpu_custom_call.1} parent=11 // pred_fallthru
          _
        // Predicated region
        $region17: #{tpu_custom_call.1} parent=11 // pred_check
          %p177 = pneg %p131
        $region18: #{tpu_custom_call.1} parent=11 // pred_check_branch
          %179 = sbr.rel (%p177) target = $region20
        $region19: #{tpu_custom_call.1} parent=11 // pred_region
          _
        $region20: #{tpu_custom_call.1} parent=11 // pred_fallthru
          _
      $region12: #{tpu_custom_call.1} parent=5 // pred_fallthru
        _
      %p180 = scmp.lt.s32.totalorder %s19, 2
      // Predicated region
      $region21: #{tpu_custom_call.1} parent=5 // pred_check
        %p181 = pneg %p180
      $region22: #{tpu_custom_call.1} parent=5 // pred_check_branch
        %183 = sbr.rel (%p181) target = $region24
      $region23: #{tpu_custom_call.1} parent=5 // pred_region
        // Predicated region
        $region25: #{tpu_custom_call.1} parent=23 // pred_check
          %p184 = pneg %p53
        $region26: #{tpu_custom_call.1} parent=23 // pred_check_branch
          %186 = sbr.rel (%p184) target = $region28
        $region27: #{tpu_custom_call.1} parent=23 // pred_region
          %s187 = sand.u32 %s43, 1
          %s188 = scalar_lea.sflag [#allocation3], %s187
          %s189 = sand.u32 %s43, 1
          %s190 = smul.addr %s189, 8
          %s191 = scalar_lea.vmem [#allocation2], %s190
          %s193 = ssub.s32 128, 128
          %194 = vsyncadd %s188, %s193
          %s195 = smul.addr %s26, 2
          %s196 = sadd.s32 %s27, %s195
          %s197 = smul.addr %s196, 128
          %s198 = scalar_lea.hbm %s0, %s197
          %s200 = sshll.u32 %s191, 4
          %s201 = int_to_ptr.vmem [resolvable:$true] %s200
          %203 = dma.hbm_to_vmem [thread:$0]  %s198, 128, %s201, %s188
        $region28: #{tpu_custom_call.1} parent=23 // pred_fallthru
          _
        // Predicated region
        $region29: #{tpu_custom_call.1} parent=23 // pred_check
          %p204 = pneg %p83
        $region30: #{tpu_custom_call.1} parent=23 // pred_check_branch
          %206 = sbr.rel (%p204) target = $region32
        $region31: #{tpu_custom_call.1} parent=23 // pred_region
          %s207 = sand.u32 %s73, 1
          %s208 = scalar_lea.sflag [#allocation6], %s207
          %s209 = sand.u32 %s73, 1
          %s210 = smul.addr %s209, 8
          %s211 = scalar_lea.vmem [#allocation5], %s210
          %s212 = sadd.s32 %s27, 1
          %s214 = ssub.s32 128, 128
          %215 = vsyncadd %s208, %s214
          %s216 = smul.addr %s26, 2
          %s217 = sadd.s32 %s212, %s216
          %s218 = smul.addr %s217, 128
          %s219 = scalar_lea.hbm %s1, %s218
          %s221 = sshll.u32 %s211, 4
          %s222 = int_to_ptr.vmem [resolvable:$true] %s221
          %224 = dma.hbm_to_vmem [thread:$0]  %s219, 128, %s222, %s208
        $region32: #{tpu_custom_call.1} parent=23 // pred_fallthru
          _
      $region24: #{tpu_custom_call.1} parent=5 // pred_fallthru
        _
      %p225 = scmp.le.s32.totalorder 1, %s19
      %p226 = scmp.lt.s32.totalorder %s19, 3
      %p227 = pnand %p225, %p226
      %p228 = pneg %p227
      // Predicated region
      $region33: #{tpu_custom_call.1} parent=5 // pred_check
        _
      $region34: #{tpu_custom_call.1} parent=5 // pred_check_branch
        %230 = sbr.rel (%p227) target = $region36
      $region35: #{tpu_custom_call.1} parent=5 // pred_region
        %s231 = ssub.s32 %s19, 1
        %s232 = sand.u32 %s46, 1
        %s233 = scalar_lea.sflag [#allocation3], %s232
        %s234 = sand.u32 %s46, 1
        %s235 = smul.addr %s234, 8
        %s236 = scalar_lea.vmem [#allocation2], %s235
        // Predicated region
        $region37: #{tpu_custom_call.1} parent=35 // pred_check
          %p237 = pneg %p59
        $region38: #{tpu_custom_call.1} parent=35 // pred_check_branch
          %239 = sbr.rel (%p237) target = $region40
        $region39: #{tpu_custom_call.1} parent=35 // pred_region
          %240 = dma.done %s233, 128
        $region40: #{tpu_custom_call.1} parent=35 // pred_fallthru
          _
        %s241 = sand.u32 %s76, 1
        %s242 = scalar_lea.sflag [#allocation6], %s241
        %s243 = sand.u32 %s76, 1
        %s244 = smul.addr %s243, 8
        %s245 = scalar_lea.vmem [#allocation5], %s244
        // Predicated region
        $region41: #{tpu_custom_call.1} parent=35 // pred_check
          %p246 = pneg %p89
        $region42: #{tpu_custom_call.1} parent=35 // pred_check_branch
          %248 = sbr.rel (%p246) target = $region44
        $region43: #{tpu_custom_call.1} parent=35 // pred_region
          %249 = dma.done %s242, 128
        $region44: #{tpu_custom_call.1} parent=35 // pred_fallthru
          _
        %s250 = sand.u32 %s46, 1
        %s251 = scalar_lea.sflag [#allocation3], %s250
        %s252 = sand.u32 %s46, 1
        %s253 = smul.addr %s252, 8
        %s254 = scalar_lea.vmem [#allocation2], %s253
        %p255 = pneg %p59
        %p256 = pneg %p56
        %s257 = sand.u32 %s76, 1
        %s258 = scalar_lea.sflag [#allocation6], %s257
        %s259 = sand.u32 %s76, 1
        %s260 = smul.addr %s259, 8
        %s261 = scalar_lea.vmem [#allocation5], %s260
        %p262 = pneg %p89
        %p263 = pneg %p86
        %p264 = pneg %p110
        %p265 = pneg %p107
        %p266 = pneg %p131
        %p267 = pneg %p128
        %p268 = pneg %p159
        %p269 = pneg %p156
        %s270 = sand.u32 %s146, 1
        %s271 = scalar_lea.sflag [#allocation4], %s270
        %s272 = sand.u32 %s146, 1
        %s273 = smul.addr %s272, 8
        %s274 = scalar_lea.vmem [#allocation7], %s273
        %s275 = sadd.s32 %s29, 1
        %v276 = vld [vmem:[%s236] sm:$0xff]
        %v277 = vld [vmem:[%s245] sm:$0xff]
        %280 = vrot.lane.b32.xlu0 %v276, 126
        %v281 = vpop.permute.xlu0 %280
        %282 = vrot.lane.b32.xlu0 %v277, 126
        %v283 = vpop.permute.xlu0 %282
        %vm284 = vcmask 1031168
        %v285 = vsel %vm284, %v281, %v283
        %287 = vrot.lane.b32.xlu0 %v276, 124
        %v288 = vpop.permute.xlu0 %287
        %289 = vrot.lane.b32.xlu0 %v277, 124
        %v290 = vpop.permute.xlu0 %289
        %vm291 = vcmask 1014784
        %v292 = vsel %vm291, %v288, %v290
        %v294 = vld [vmem:[%s2] sm:$0xff]
        %v295 = vld [vmem:[%s3] sm:$0xff]
        %297 = vset.pattern.permute.xlu0 0
        %298 = vperm.xlu0 %297, %v295
        %v299 = vpop.permute.xlu0 %298
        %vm301 = vcmask 195584
        %v303 = vsel %vm301, %v294, 0
        %305 = vmatprep.subr.mxu0 0.0
        %306 = vmatpush1.msra.mxu0 %v276
        %307 = vmatprep.subr.mxu0 0.0
        %308 = vmatpush1.msra.mxu0 %v285
        %309 = vmatprep.subr.mxu0 0.0
        %310 = vmatpush1.msra.mxu0 %v292
        %311 = vmatprep.subr.mxu0 0.0
        %312 = vmatpush1.msra.mxu0 0.0
        %313 = vmatprep.subr.mxu0 0.0
        %314 = vmatpush1.msra.mxu0 0.0
        %315 = vmatprep.subr.mxu0 0.0
        %316 = vmatpush1.msra.mxu0 0.0
        %317 = vmatprep.subr.mxu0 0.0
        %318 = vmatpush1.msra.mxu0 0.0
        %319 = vmatprep.subr.mxu0 0.0
        %320 = vmatpush1.msra.mxu0 0.0
        %321 = vmatprep.subr.mxu0 0.0
        %322 = vmatpush1.msra.mxu0 0.0
        %323 = vmatprep.subr.mxu0 0.0
        %324 = vmatpush1.msra.mxu0 0.0
        %325 = vmatprep.subr.mxu0 0.0
        %326 = vmatpush1.msra.mxu0 0.0
        %327 = vmatprep.subr.mxu0 0.0
        %328 = vmatpush1.msra.mxu0 0.0
        %329 = vmatprep.subr.mxu0 0.0
        %330 = vmatpush1.msra.mxu0 0.0
        %331 = vmatprep.subr.mxu0 0.0
        %332 = vmatpush1.msra.mxu0 0.0
        %333 = vmatprep.subr.mxu0 0.0
        %334 = vmatpush1.msra.mxu0 0.0
        %335 = vmatprep.subr.mxu0 0.0
        %336 = vmatpush1.msra.mxu0 0.0
        %337 = vmatprep.subr.mxu0 0.0
        %338 = vmatpush1.msra.mxu0 0.0
        %339 = vmatprep.subr.mxu0 0.0
        %340 = vmatpush1.msra.mxu0 0.0
        %341 = vmatprep.subr.mxu0 0.0
        %342 = vmatpush1.msra.mxu0 0.0
        %343 = vmatprep.subr.mxu0 0.0
        %344 = vmatpush1.msra.mxu0 0.0
        %345 = vmatprep.subr.mxu0 0.0
        %346 = vmatpush1.msra.mxu0 0.0
        %347 = vmatprep.subr.mxu0 0.0
        %348 = vmatpush1.msra.mxu0 0.0
        %349 = vmatprep.subr.mxu0 0.0
        %350 = vmatpush1.msra.mxu0 0.0
        %351 = vmatprep.subr.mxu0 0.0
        %352 = vmatpush1.msra.mxu0 0.0
        %353 = vmatprep.subr.mxu0 0.0
        %354 = vmatpush1.msra.mxu0 0.0
        %355 = vmatprep.subr.mxu0 0.0
        %356 = vmatpush1.msra.mxu0 0.0
        %357 = vmatprep.subr.mxu0 0.0
        %358 = vmatpush1.msra.mxu0 0.0
        %359 = vmatprep.subr.mxu0 0.0
        %360 = vmatpush1.msra.mxu0 0.0
        %361 = vmatprep.subr.mxu0 0.0
        %362 = vmatpush1.msra.mxu0 0.0
        %363 = vmatprep.subr.mxu0 0.0
        %364 = vmatpush1.msra.mxu0 0.0
        %365 = vmatprep.subr.mxu0 0.0
        %366 = vmatpush1.msra.mxu0 0.0
        %367 = vmatprep.subr.mxu0 0.0
        %368 = vmatpush1.msra.mxu0 0.0
        %369 = vmatprep.mubr.f32.mxu0 0.0
        %370 = vmatmul.mubr.f32.gmra.mrb[0].mxu0 %v303
        %v371 = vpop.f32.mrb[0].mxu0
        %v372 = vadd.f32 %v299, %v371
        %v373 = vpop.f32.mrb[0].mxu0
        %374 = vdwg.mxu0
        %375 = vst [vmem:[%s274] sm:$0xff] %v372
        %s376 = sand.u32 %s146, 1
        %s377 = scalar_lea.sflag [#allocation4], %s376
        %s378 = sand.u32 %s146, 1
        %s379 = smul.addr %s378, 8
        %s380 = scalar_lea.vmem [#allocation7], %s379
        // Predicated region
        $region45: #{tpu_custom_call.1} parent=35 // pred_check
          %p381 = pneg %p156
        $region46: #{tpu_custom_call.1} parent=35 // pred_check_branch
          %383 = sbr.rel (%p381) target = $region48
        $region47: #{tpu_custom_call.1} parent=35 // pred_region
          %s385 = ssub.s32 128, 128
          %386 = vsyncadd %s377, %s385
          %s387 = sadd.s32 %s29, %s28
          %s388 = smul.addr %s387, 128
          %s389 = scalar_lea.hbm %s4, %s388
          %s391 = sshll.u32 %s380, 4
          %s392 = int_to_ptr.vmem [resolvable:$true] %s391
          %394 = dma.vmem_to_hbm [thread:$0]  %s392, 128, %s389, %s377
        $region48: #{tpu_custom_call.1} parent=35 // pred_fallthru
          _
      $region36: #{tpu_custom_call.1} parent=5 // pred_fallthru
        _
      %p395 = scmp.le.s32.totalorder 2, %s19
      // Predicated region
      $region49: #{tpu_custom_call.1} parent=5 // pred_check
        %p396 = pneg %p395
      $region50: #{tpu_custom_call.1} parent=5 // pred_check_branch
        %398 = sbr.rel (%p396) target = $region52
      $region51: #{tpu_custom_call.1} parent=5 // pred_region
        %s399 = ssub.s32 %s19, 2
        // Predicated region
        $region53: #{tpu_custom_call.1} parent=51 // pred_check
          %p400 = pneg %p162
        $region54: #{tpu_custom_call.1} parent=51 // pred_check_branch
          %402 = sbr.rel (%p400) target = $region56
        $region55: #{tpu_custom_call.1} parent=51 // pred_region
          %s403 = sand.u32 %s147, 1
          %s404 = scalar_lea.sflag [#allocation4], %s403
          %s405 = sand.u32 %s147, 1
          %s406 = smul.addr %s405, 8
          %s407 = scalar_lea.vmem [#allocation7], %s406
          %408 = dma.done %s404, 128
        $region56: #{tpu_custom_call.1} parent=51 // pred_fallthru
          _
      $region52: #{tpu_custom_call.1} parent=5 // pred_fallthru
        _
    $region6: #{tpu_custom_call.1} parent=1 // loop_footer
      %s23 = sadd.s32 1, %s19
    $region7: #{tpu_custom_call.1} parent=1 // loop_footer_branch
      %18 = sbr.rel target = $region3
    $region8: #{tpu_custom_call.1} parent=1 // loop_exit
      _
    %409 = vsyncpa [#allocation3], 1
    %s410 = scalar_lea.sflag [#allocation3], 1
    %411 = vsyncpa %s410, 1
    %412 = vsyncpa [#allocation6], 1
    %s413 = scalar_lea.sflag [#allocation6], 1
    %414 = vsyncpa %s413, 1
    %415 = vsyncpa [#allocation4], 1
    %s416 = scalar_lea.sflag [#allocation4], 1
    %417 = vsyncpa %s416, 1

</llo_original>
